<compile_context>
chip_gen: v7x
topology: tpu7x:2x2x1
jax: 0.10.0
libtpu: 0.0.40
codegen_flags: <defaults>
</compile_context>

<pallas_src>
import jax
import jax.numpy as jnp
from jax.experimental import pallas as pl
from jax.experimental.pallas import tpu as pltpu

EPS = 1e-5


def _round_up(a: int, b: int) -> int:
    return (a + b - 1) // b * b


def prenorm_kernel(x_ref, wT_ref, bias_ref, o_ref):
    # x_ref: (TM, D) tile of flattened tokens.
    x = x_ref[...].astype(jnp.float32)                       # (TM, D)

    # --- LayerNorm over last axis (biased variance, eps=1e-5, f32 stats) ---
    mean = jnp.mean(x, axis=-1, keepdims=True)               # (TM, 1)
    centered = x - mean
    var = jnp.mean(centered * centered, axis=-1, keepdims=True)
    xn = centered * jax.lax.rsqrt(var + EPS)                 # gamma/beta folded into W/b

    # --- fn = Linear: y = xn @ (gamma-folded W^T) + (beta-folded bias) ---
    y = jnp.dot(xn.astype(jnp.bfloat16), wT_ref[...],
                preferred_element_type=jnp.float32)          # (TM, TN) f32 acc
    o_ref[...] = (y + bias_ref[...]).astype(o_ref.dtype)


def prenorm_linear(x, gamma, beta, w, bias, *, tm=1024, out_dtype=None):
    """PreNorm(dim, Linear(dim, dim)).forward(x).

    x: (B, S, D); gamma/beta: (D,); w: (D_out, D_in) PyTorch layout; bias: (D_out,).
    out_dtype: output dtype (default x.dtype); pass jnp.bfloat16 to halve
               store-side HBM bytes when the consumer accepts bf16.
    """
    B, S, D = x.shape
    D_out, D_in = w.shape
    assert D_in == D
    out_dtype = jnp.dtype(x.dtype) if out_dtype is None else jnp.dtype(out_dtype)

    tokens = B * S
    x2 = x.reshape(tokens, D)

    # --- Fold LN affine into the linear layer (f32, done once by XLA) ---
    w_f32 = jnp.asarray(w, jnp.float32)                      # (D_out, D_in)
    gamma_f32 = jnp.asarray(gamma, jnp.float32)
    beta_f32 = jnp.asarray(beta, jnp.float32)
    bias_f32 = jnp.asarray(bias, jnp.float32)
    wT_eff = (w_f32 * gamma_f32[None, :]).T.astype(jnp.bfloat16)   # (D, D_out)
    bias_eff = beta_f32 @ w_f32.T + bias_f32                        # (D_out,) f32

    # Lane-dense output: pad D_out to a multiple of 128 (avoids vst.msk stores).
    D_out_pad = _round_up(D_out, 128)
    if D_out_pad != D_out:
        wT_eff = jnp.pad(wT_eff, ((0, 0), (0, D_out_pad - D_out)))
        bias_eff = jnp.pad(bias_eff, (0, D_out_pad - D_out))
    bias_eff = bias_eff.reshape(1, D_out_pad)

    # --- Tile sizes ---
    # Token tile: large (amortizes ~0.35 us/grid-step overhead), multiple of 8,
    # capped so the grid has >= 2 steps (both v7x TensorCores get work).
    tm = max(8, min(tm, _round_up(pl.cdiv(tokens, 2), 8)))
    grid_m = pl.cdiv(tokens, tm)

    # N tile: whole D_out unless the double-buffered bf16 weight block would
    # blow the VMEM budget (relevant on v7x / very large D). K = D stays whole
    # because LayerNorm needs the full row.
    tn = D_out_pad
    while D * tn * 2 * 2 > (16 << 20) and tn > 128 and tn % 256 == 0:
        tn //= 2
    grid_n = D_out_pad // tn

    # Raise the scoped-VMEM limit when big tiles need it (v6e default is 32 MiB).
    vmem_est = (2 * tm * D * x.dtype.itemsize          # x tiles   (double-buffered)
                + 2 * D * tn * 2                        # bf16 weight block
                + 2 * 8 * tn * 4                        # bias block (sublane-padded)
                + 2 * tm * tn * out_dtype.itemsize)     # out tiles (double-buffered)
    vmem_limit = min(max(vmem_est + (8 << 20), 32 << 20), 100 << 20)

    out = pl.pallas_call(
        prenorm_kernel,
        out_shape=jax.ShapeDtypeStruct((tokens, D_out_pad), out_dtype),
        grid_spec=pltpu.PrefetchScalarGridSpec(
            num_scalar_prefetch=0,
            grid=(grid_m, grid_n),
            in_specs=[
                pl.BlockSpec((tm, D), lambda i, j: (i, 0)),     # x token tile
                pl.BlockSpec((D, tn), lambda i, j: (0, j)),     # gamma-folded W^T (bf16)
                pl.BlockSpec((1, tn), lambda i, j: (0, j)),     # beta-folded bias (f32)
            ],
            out_specs=pl.BlockSpec((tm, tn), lambda i, j: (i, j)),
        ),
        compiler_params=pltpu.CompilerParams(
            dimension_semantics=("parallel", "parallel"),
            vmem_limit_bytes=vmem_limit,
        ),
        # TODO(synk): on v7x, single-buffer the grid-invariant W^T/bias blocks
        # (pipeline_mode=pl.Buffered(1)) to free ~half the resident-weight VMEM.
    )(x2, wT_eff, bias_eff)

    if D_out_pad != D_out:
        out = out[:, :D_out]
    return out.reshape(B, S, D_out)


def prenorm_linear_ref(x, gamma, beta, w, bias):
    """Pure-JAX f32 reference: LayerNorm then Linear."""
    xf = x.astype(jnp.float32)
    mean = jnp.mean(xf, axis=-1, keepdims=True)
    var = jnp.mean((xf - mean) ** 2, axis=-1, keepdims=True)
    xn = (xf - mean) * jax.lax.rsqrt(var + EPS)
    xn = xn * gamma.astype(jnp.float32) + beta.astype(jnp.float32)
    return xn @ jnp.asarray(w, jnp.float32).T + bias.astype(jnp.float32)


def prenorm_linear_ref_matched(x, gamma, beta, w, bias):
    """Reference matching the kernel numerics (fold + bf16 MXU operands)."""
    xf = x.astype(jnp.float32)
    mean = jnp.mean(xf, axis=-1, keepdims=True)
    var = jnp.mean((xf - mean) ** 2, axis=-1, keepdims=True)
    xn = (xf - mean) * jax.lax.rsqrt(var + EPS)
    w_f32 = jnp.asarray(w, jnp.float32)
    wT_eff = (w_f32 * gamma.astype(jnp.float32)[None, :]).T.astype(jnp.bfloat16)
    bias_eff = beta.astype(jnp.float32) @ w_f32.T + bias.astype(jnp.float32)
    y = jnp.dot(xn.astype(jnp.bfloat16), wT_eff,
                preferred_element_type=jnp.float32)
    return y + bias_eff


if __name__ == "__main__":
    # Small but lane-dense shapes: batch=2, seq=8, hidden dim=128.
    B, S, D = 2, 8, 128

    key = jax.random.PRNGKey(0)
    kx, kw, kb, kg, kbt = jax.random.split(key, 5)

    x = jax.random.normal(kx, (B, S, D), dtype=jnp.float32)

    # Non-trivial LayerNorm affine params (exercises the gamma/beta fold).
    gamma = 1.0 + 0.1 * jax.random.normal(kg, (D,), dtype=jnp.float32)
    beta = 0.05 * jax.random.normal(kbt, (D,), dtype=jnp.float32)

    # fn = Linear(D, D) parameters (PyTorch (D_out, D_in) layout).
    w = jax.random.normal(kw, (D, D), dtype=jnp.float32) * (1.0 / jnp.sqrt(D))
    bias = 0.02 * jax.random.normal(kb, (D,), dtype=jnp.float32)

    out = jax.block_until_ready(prenorm_linear(x, gamma, beta, w, bias))
    assert out.shape == (B, S, D)
    assert out.dtype == x.dtype

    # Tight check vs a reference with the same fold + bf16 MXU operands.
    ref_m = prenorm_linear_ref_matched(x, gamma, beta, w, bias)
    assert jnp.allclose(out, ref_m.astype(out.dtype), atol=2e-3, rtol=2e-3), \
        "mismatch vs matched bf16 reference"

    # Looser check vs the full-f32 reference (bf16 MXU rounding only).
    ref = prenorm_linear_ref(x, gamma, beta, w, bias)
    assert jnp.allclose(out, ref.astype(out.dtype), atol=5e-2, rtol=5e-2), \
        "mismatch vs f32 reference"

    # bf16-output path (halves store-side HBM bytes for memory-bound use).
    out_bf16 = jax.block_until_ready(
        prenorm_linear(x, gamma, beta, w, bias, out_dtype=jnp.bfloat16))
    assert out_bf16.dtype == jnp.bfloat16
    assert jnp.allclose(out_bf16.astype(jnp.float32), ref, atol=6e-2, rtol=6e-2), \
        "mismatch in bf16-output path"

    print("KERNEL_OK")
</pallas_src>

<mosaic_0001>
module attributes {stable_mosaic.version = 11 : i64} {
  func.func @prenorm_kernel(%arg0: i32, %arg1: i32, %arg2: memref<8x128xf32, #tpu.memory_space<vmem>>, %arg3: memref<128x128xbf16, #tpu.memory_space<vmem>>, %arg4: memref<1x128xf32, #tpu.memory_space<vmem>>, %arg5: memref<8x128xf32, #tpu.memory_space<vmem>>) attributes {dimension_semantics = [#tpu.dimension_semantics<parallel>, #tpu.dimension_semantics<parallel>], iteration_bounds = array<i64: 2, 1>, scalar_prefetch = 0 : i64, scratch_operands = 0 : i64, tpu.core_type = #tpu.core_type<tc>, window_params = [{transform_indices = @transform_0, window_bounds = array<i64: 8, 128>}, {transform_indices = @transform_1, window_bounds = array<i64: 128, 128>}, {transform_indices = @transform_2, window_bounds = array<i64: 1, 128>}, {transform_indices = @transform_3, window_bounds = array<i64: 8, 128>}]} {
    %c0 = arith.constant 0 : index
    %c0_0 = arith.constant 0 : index
    %0 = vector.load %arg2[%c0, %c0_0] : memref<8x128xf32, #tpu.memory_space<vmem>>, vector<8x128xf32>
    %cst = arith.constant dense<0.000000e+00> : vector<8xf32>
    %1 = vector.multi_reduction <add>, %0, %cst [1] : vector<8x128xf32> to vector<8xf32>
    %2 = vector.shape_cast %1 : vector<8xf32> to vector<8x1xf32>
    %cst_1 = arith.constant 1.280000e+02 : f32
    %3 = vector.broadcast %cst_1 : f32 to vector<8x1xf32>
    %4 = arith.divf %2, %3 : vector<8x1xf32>
    %5 = vector.broadcast %4 : vector<8x1xf32> to vector<8x128xf32>
    %6 = arith.subf %0, %5 : vector<8x128xf32>
    %7 = arith.mulf %6, %6 : vector<8x128xf32>
    %cst_2 = arith.constant dense<0.000000e+00> : vector<8xf32>
    %8 = vector.multi_reduction <add>, %7, %cst_2 [1] : vector<8x128xf32> to vector<8xf32>
    %9 = vector.shape_cast %8 : vector<8xf32> to vector<8x1xf32>
    %cst_3 = arith.constant 1.280000e+02 : f32
    %10 = vector.broadcast %cst_3 : f32 to vector<8x1xf32>
    %11 = arith.divf %9, %10 : vector<8x1xf32>
    %cst_4 = arith.constant 9.99999974E-6 : f32
    %12 = vector.broadcast %cst_4 : f32 to vector<8x1xf32>
    %13 = arith.addf %11, %12 : vector<8x1xf32>
    %14 = math.rsqrt %13 : vector<8x1xf32>
    %15 = vector.broadcast %14 : vector<8x1xf32> to vector<8x128xf32>
    %16 = arith.mulf %6, %15 : vector<8x128xf32>
    %17 = arith.truncf %16 : vector<8x128xf32> to vector<8x128xbf16>
    %c0_5 = arith.constant 0 : index
    %c0_6 = arith.constant 0 : index
    %18 = vector.load %arg3[%c0_5, %c0_6] : memref<128x128xbf16, #tpu.memory_space<vmem>>, vector<128x128xbf16>
    %cst_7 = arith.constant dense<0.000000e+00> : vector<8x128xf32>
    %19 = tpu.matmul %17, %18, %cst_7 {dimension_numbers = #tpu.dot_dimension_numbers<[1], [0], [0], [1], [0, 0, 1, 1], [], []>} : vector<8x128xbf16>, vector<128x128xbf16>, vector<8x128xf32> -> vector<8x128xf32>
    %c0_8 = arith.constant 0 : index
    %c0_9 = arith.constant 0 : index
    %20 = vector.load %arg4[%c0_8, %c0_9] : memref<1x128xf32, #tpu.memory_space<vmem>>, vector<1x128xf32>
    %21 = vector.broadcast %20 : vector<1x128xf32> to vector<8x128xf32>
    %22 = arith.addf %19, %21 : vector<8x128xf32>
    %c0_10 = arith.constant 0 : index
    %c0_11 = arith.constant 0 : index
    %23 = vector.load %arg5[%c0_10, %c0_11] : memref<8x128xf32, #tpu.memory_space<vmem>>, vector<8x128xf32>
    tpu.vector_store %arg5[%c0_10, %c0_11], %22 {strides = array<i32>} : memref<8x128xf32, #tpu.memory_space<vmem>>, vector<8x128xf32>,
    return
  }
  func.func @transform_0(%arg0: i32, %arg1: i32) -> (i32, i32) {
    %c0_i32 = arith.constant 0 : i32
    %c0_i32_0 = arith.constant 0 : i32
    return %arg0, %c0_i32 : i32, i32
  }
  func.func @transform_1(%arg0: i32, %arg1: i32) -> (i32, i32) {
    %c0_i32 = arith.constant 0 : i32
    %c0_i32_0 = arith.constant 0 : i32
    return %c0_i32, %arg1 : i32, i32
  }
  func.func @transform_2(%arg0: i32, %arg1: i32) -> (i32, i32) {
    %c0_i32 = arith.constant 0 : i32
    %c0_i32_0 = arith.constant 0 : i32
    return %c0_i32, %arg1 : i32, i32
  }
  func.func @transform_3(%arg0: i32, %arg1: i32) -> (i32, i32) {
    %c0_i32 = arith.constant 0 : i32
    return %arg0, %arg1 : i32, i32
  }
}

</mosaic_0001>

<llo_original>
// kernel: tpu_custom_call.1
$region0: #{tpu_custom_call.1}
  #allocation0 [shape = 'u32[]', space=smem, size = 0x4, offset = 0x4, fixed_abs, tag = 'smem constant byte address 0x4 - core index']
  #allocation1 [shape = 'u32[144,128]{1,0:T(1,128)}', space=vmem, size = 0x12000, scoped, tag = 'internal scratch']
  %s0 = inlined_call_operand.hbm [shape: f32[16,128], index: 0, kind: input, shape index: {}]
  %s1 = inlined_call_operand.hbm [shape: bf16[128,128], index: 1, kind: input, shape index: {}]
  %s2 = inlined_call_operand.vmem [shape: f32[1,128], index: 2, kind: input, shape index: {}]
  %s3 = inlined_call_operand.hbm [shape: f32[16,128], index: 3, kind: output, shape index: {}]
  %s4 = sld [smem:[#allocation0]]
  $region53: #{tpu_custom_call.1} parent=0
    _
  %s6 = ssub.s32 1, %s4
  %s7 = scalar_select 0, %s6, %s4
  $region1: #{tpu_custom_call.1} parent=0
    #allocation2 [shape = 'u8[8192]{0}', space=vmem, size = 0x2000, scoped, tag = 'input window, operand 0']
    #allocation3 [shape = 's32[2]{0}', space=sflag, size = 0x8, scoped, tag = 'scoped memory for tpu_custom_call.1']
    #allocation4 [shape = 's32[2]{0}', space=sflag, size = 0x8, scoped, tag = 'scoped memory for tpu_custom_call.1']
    #allocation5 [shape = 'u8[32768]{0}', space=vmem, size = 0x8000, scoped, tag = 'input window, operand 1, single buffered']
    #allocation6 [shape = 's32[1]{0}', space=sflag, size = 0x4, scoped, tag = 'scoped memory for tpu_custom_call.1']
    #allocation7 [shape = 'u8[8192]{0}', space=vmem, size = 0x2000, scoped, tag = 'output window, operand 0']
    %8 = vsyncpa [#allocation3], 0
    %s9 = scalar_lea.sflag [#allocation3], 1
    %10 = vsyncpa %s9, 0
    %11 = vsyncpa [#allocation6], 0
    %12 = vsyncpa [#allocation4], 0
    %s13 = scalar_lea.sflag [#allocation4], 1
    %14 = vsyncpa %s13, 0
    loop: start=0, step=1, limit=4
    $region2: #{tpu_custom_call.1} parent=1 // loop_pre_header
      _
    $region3: #{tpu_custom_call.1} parent=1 // loop_header
      %s16 = sphi 0, %s20
      %p17 = scmp.ge.s32.totalorder %s16, 4
      %s23 = sphi 0, %s35
      %s24 = sphi 0, %s31
      %s25 = sphi 0, %s23
      %s26 = sphi 0, %s24
      %s27 = sphi 0, %s25
      %s28 = sphi 0, %s26
      %s38 = sphi 0, %s40
      %s41 = sphi 0, %s38
      %s42 = sphi 0, %s41
      %s58 = sphi 0, %s42
      %s64 = sphi 0, %s66
      %s67 = sphi 0, %s64
      %s68 = sphi 0, %s67
      %s84 = sphi 0, %s68
      %s90 = sphi 0, %s92
      %s93 = sphi 0, %s90
      %s94 = sphi 0, %s93
      %s110 = sphi 0, %s94
      %s118 = sphi 0, %s120
      %s121 = sphi 0, %s118
      %s122 = sphi 0, %s121
      %s138 = sphi 0, %s122
    $region4: #{tpu_custom_call.1} parent=1 // loop_header_branch
      %19 = sbr.rel (%p17) target = $region8
    $region5: #{tpu_custom_call.1} parent=1 // loop_body
      %s21 = ssub.s32 %s16, 1
      %s22 = ssub.s32 %s16, 2
      %s29 = sadd.s32 1, %s24
      %p30 = scmp.ge.s32.totalorder %s29, 1
      %s31 = scalar_select %p30, 0, %s29
      %s32 = sadd.s32 1, %s23
      %s33 = scalar_select %p30, %s32, %s23
      %p34 = scmp.ge.s32.totalorder %s33, 2
      %s35 = scalar_select %p34, 0, %s33
      %s36 = ssub.s32 %s23, %s35
      %p37 = scmp.eq.s32.totalorder %s36, 0
      %s39 = sadd.s32 %s38, 1
      %s40 = scalar_select %p37, %s38, %s39
      %p43 = pneg %p37
      %p44 = scmp.eq.s32.totalorder %s16, 1
      %p45 = por %p43, %p44
      %p46 = scmp.ne.s32.totalorder %s38, %s41
      %p47 = scmp.eq.s32.totalorder %s16, 0
      %p48 = por %p46, %p47
      %p49 = scmp.ne.s32.totalorder %s38, %s41
      %p50 = scmp.eq.s32.totalorder %s21, 1
      %p51 = por %p49, %p50
      %p52 = scmp.ne.s32.totalorder %s41, %s42
      %p53 = scmp.eq.s32.totalorder %s21, 0
      %p54 = por %p52, %p53
      %p55 = scmp.ne.s32.totalorder %s41, %s42
      %p56 = scmp.eq.s32.totalorder %s22, 1
      %p57 = por %p55, %p56
      %p59 = scmp.ne.s32.totalorder %s42, %s58
      %p60 = scmp.eq.s32.totalorder %s22, 0
      %p61 = por %p59, %p60
      %s62 = ssub.s32 %s24, %s31
      %p63 = scmp.eq.s32.totalorder %s62, 0
      %s65 = sadd.s32 %s64, 1
      %s66 = scalar_select %p63, %s64, %s65
      %p69 = pneg %p63
      %p70 = scmp.eq.s32.totalorder %s16, 1
      %p71 = por %p69, %p70
      %p72 = scmp.ne.s32.totalorder %s64, %s67
      %p73 = scmp.eq.s32.totalorder %s16, 0
      %p74 = por %p72, %p73
      %p75 = scmp.ne.s32.totalorder %s64, %s67
      %p76 = scmp.eq.s32.totalorder %s21, 1
      %p77 = por %p75, %p76
      %p78 = scmp.ne.s32.totalorder %s67, %s68
      %p79 = scmp.eq.s32.totalorder %s21, 0
      %p80 = por %p78, %p79
      %p81 = scmp.ne.s32.totalorder %s67, %s68
      %p82 = scmp.eq.s32.totalorder %s22, 1
      %p83 = por %p81, %p82
      %p85 = scmp.ne.s32.totalorder %s68, %s84
      %p86 = scmp.eq.s32.totalorder %s22, 0
      %p87 = por %p85, %p86
      %s88 = ssub.s32 %s24, %s31
      %p89 = scmp.eq.s32.totalorder %s88, 0
      %s91 = sadd.s32 %s90, 1
      %s92 = scalar_select %p89, %s90, %s91
      %p95 = pneg %p89
      %p96 = scmp.eq.s32.totalorder %s16, 1
      %p97 = por %p95, %p96
      %p98 = scmp.ne.s32.totalorder %s90, %s93
      %p99 = scmp.eq.s32.totalorder %s16, 0
      %p100 = por %p98, %p99
      %p101 = scmp.ne.s32.totalorder %s90, %s93
      %p102 = scmp.eq.s32.totalorder %s21, 1
      %p103 = por %p101, %p102
      %p104 = scmp.ne.s32.totalorder %s93, %s94
      %p105 = scmp.eq.s32.totalorder %s21, 0
      %p106 = por %p104, %p105
      %p107 = scmp.ne.s32.totalorder %s93, %s94
      %p108 = scmp.eq.s32.totalorder %s22, 1
      %p109 = por %p107, %p108
      %p111 = scmp.ne.s32.totalorder %s94, %s110
      %p112 = scmp.eq.s32.totalorder %s22, 0
      %p113 = por %p111, %p112
      %s114 = ssub.s32 %s23, %s35
      %s115 = ssub.s32 %s24, %s31
      %s116 = sor.u32 %s114, %s115
      %p117 = scmp.eq.s32.totalorder %s116, 0
      %s119 = sadd.s32 %s118, 1
      %s120 = scalar_select %p117, %s118, %s119
      %p123 = pneg %p117
      %p124 = scmp.eq.s32.totalorder %s16, 1
      %p125 = por %p123, %p124
      %p126 = scmp.ne.s32.totalorder %s118, %s121
      %p127 = scmp.eq.s32.totalorder %s16, 0
      %p128 = por %p126, %p127
      %p129 = scmp.ne.s32.totalorder %s118, %s121
      %p130 = scmp.eq.s32.totalorder %s21, 1
      %p131 = por %p129, %p130
      %p132 = scmp.ne.s32.totalorder %s121, %s122
      %p133 = scmp.eq.s32.totalorder %s21, 0
      %p134 = por %p132, %p133
      %p135 = scmp.ne.s32.totalorder %s121, %s122
      %p136 = scmp.eq.s32.totalorder %s22, 1
      %p137 = por %p135, %p136
      %p139 = scmp.ne.s32.totalorder %s122, %s138
      %p140 = scmp.eq.s32.totalorder %s22, 0
      %p141 = por %p139, %p140
      %p142 = scmp.le.s32.totalorder 1, %s16
      %p143 = scmp.lt.s32.totalorder %s16, 3
      %p144 = pnand %p142, %p143
      %p145 = pneg %p144
      // Predicated region
      $region9: #{tpu_custom_call.1} parent=5 // pred_check
        _
      $region10: #{tpu_custom_call.1} parent=5 // pred_check_branch
        %147 = sbr.rel (%p144) target = $region12
      $region11: #{tpu_custom_call.1} parent=5 // pred_region
        %s148 = ssub.s32 %s16, 1
        // Predicated region
        $region13: #{tpu_custom_call.1} parent=11 // pred_check
          %p149 = pneg %p80
        $region14: #{tpu_custom_call.1} parent=11 // pred_check_branch
          %151 = sbr.rel (%p149) target = $region16
        $region15: #{tpu_custom_call.1} parent=11 // pred_region
          %s153 = ssub.s32 1024, 1024
          %154 = vsyncadd [#allocation6], %s153
          %s155 = smul.addr %s26, 64
          %s156 = scalar_lea.hbm %s1, %s155
          %s157 = sshll.u32 [#allocation5], 4
          %s158 = int_to_ptr.vmem [resolvable:$true] %s157
          %163 = dma.hbm_to_vmem [thread:$0]  %s156, 1024, %s158, [#allocation6], 64, 64, 4
        $region16: #{tpu_custom_call.1} parent=11 // pred_fallthru
          _
        // Predicated region
        $region17: #{tpu_custom_call.1} parent=11 // pred_check
          %p164 = pneg %p106
        $region18: #{tpu_custom_call.1} parent=11 // pred_check_branch
          %166 = sbr.rel (%p164) target = $region20
        $region19: #{tpu_custom_call.1} parent=11 // pred_region
          %p167 = scmp.lt.s32.totalorder %s26, 0
          %s168 = scalar_select %p167, %s26, 0
          %s169 = scalar_lea.vmem %s2, %s168
        $region20: #{tpu_custom_call.1} parent=11 // pred_fallthru
          _
      $region12: #{tpu_custom_call.1} parent=5 // pred_fallthru
        _
      %p170 = scmp.lt.s32.totalorder %s16, 2
      // Predicated region
      $region21: #{tpu_custom_call.1} parent=5 // pred_check
        %p171 = pneg %p170
      $region22: #{tpu_custom_call.1} parent=5 // pred_check_branch
        %173 = sbr.rel (%p171) target = $region24
      $region23: #{tpu_custom_call.1} parent=5 // pred_region
        // Predicated region
        $region25: #{tpu_custom_call.1} parent=23 // pred_check
          %p174 = pneg %p48
        $region26: #{tpu_custom_call.1} parent=23 // pred_check_branch
          %176 = sbr.rel (%p174) target = $region28
        $region27: #{tpu_custom_call.1} parent=23 // pred_region
          %s177 = sand.u32 %s38, 1
          %s178 = scalar_lea.sflag [#allocation3], %s177
          %s179 = sand.u32 %s38, 1
          %s180 = smul.addr %s179, 8
          %s181 = scalar_lea.vmem [#allocation2], %s180
          %s183 = ssub.s32 128, 128
          %184 = vsyncadd %s178, %s183
          %s185 = smul.addr %s23, 128
          %s186 = scalar_lea.hbm %s0, %s185
          %s188 = sshll.u32 %s181, 4
          %s189 = int_to_ptr.vmem [resolvable:$true] %s188
          %191 = dma.hbm_to_vmem [thread:$0]  %s186, 128, %s189, %s178
        $region28: #{tpu_custom_call.1} parent=23 // pred_fallthru
          _
      $region24: #{tpu_custom_call.1} parent=5 // pred_fallthru
        _
      %p192 = scmp.le.s32.totalorder 1, %s16
      %p193 = scmp.lt.s32.totalorder %s16, 3
      %p194 = pnand %p192, %p193
      %p195 = pneg %p194
      // Predicated region
      $region29: #{tpu_custom_call.1} parent=5 // pred_check
        _
      $region30: #{tpu_custom_call.1} parent=5 // pred_check_branch
        %197 = sbr.rel (%p194) target = $region32
      $region31: #{tpu_custom_call.1} parent=5 // pred_region
        %s198 = ssub.s32 %s16, 1
        %s199 = sand.u32 %s41, 1
        %s200 = scalar_lea.sflag [#allocation3], %s199
        %s201 = sand.u32 %s41, 1
        %s202 = smul.addr %s201, 8
        %s203 = scalar_lea.vmem [#allocation2], %s202
        // Predicated region
        $region33: #{tpu_custom_call.1} parent=31 // pred_check
          %p204 = pneg %p54
        $region34: #{tpu_custom_call.1} parent=31 // pred_check_branch
          %206 = sbr.rel (%p204) target = $region36
        $region35: #{tpu_custom_call.1} parent=31 // pred_region
          %207 = dma.done %s200, 128
        $region36: #{tpu_custom_call.1} parent=31 // pred_fallthru
          _
        // Predicated region
        $region37: #{tpu_custom_call.1} parent=31 // pred_check
          %p208 = pneg %p80
        $region38: #{tpu_custom_call.1} parent=31 // pred_check_branch
          %210 = sbr.rel (%p208) target = $region40
        $region39: #{tpu_custom_call.1} parent=31 // pred_region
          %211 = dma.done [#allocation6], 1024
        $region40: #{tpu_custom_call.1} parent=31 // pred_fallthru
          _
        %s212 = sand.u32 %s41, 1
        %s213 = scalar_lea.sflag [#allocation3], %s212
        %s214 = sand.u32 %s41, 1
        %s215 = smul.addr %s214, 8
        %s216 = scalar_lea.vmem [#allocation2], %s215
        %p217 = pneg %p54
        %p218 = pneg %p51
        %p219 = pneg %p80
        %p220 = pneg %p77
        %p221 = scmp.lt.s32.totalorder %s26, 0
        %s222 = scalar_select %p221, %s26, 0
        %s223 = scalar_lea.vmem %s2, %s222
        %p224 = pneg %p106
        %p225 = pneg %p103
        %p226 = pneg %p134
        %p227 = pneg %p131
        %s228 = sand.u32 %s121, 1
        %s229 = scalar_lea.sflag [#allocation4], %s228
        %s230 = sand.u32 %s121, 1
        %s231 = smul.addr %s230, 8
        %s232 = scalar_lea.vmem [#allocation7], %s231
        %p233 = scmp.lt.s32.totalorder %s26, 0
        %s234 = scalar_select %p233, %s26, 0
        %s235 = scalar_lea.vmem %s2, %s234
        %v237 = vld [vmem:[%s203] sm:$0xff]
        %238 = vadd.xlane.f32.xlu0 %v237
        %v239 = vpop.xlane.xlu0 %238
        %v240 = vrcp.pop 128.0
        %v241 = vmul.f32 %v239, %v240
        %v242 = vsub.f32 %v237, %v241
        %v243 = vmul.f32 %v242, %v242
        %244 = vadd.xlane.f32.xlu0 %v243
        %v245 = vpop.xlane.xlu0 %244
        %v246 = vmul.f32 %v245, %v240
        %v247 = vadd.f32 %v246, 1e-05
        %v248 = vrsqrt.pop %v247
        %v249 = vmul.f32 %v242, %v248
        %v250 = vpack.c.bf16 %v249, %v249
        %v251 = vld [vmem:[#allocation5] sm:$0xf]
        %v252 = vld [vmem:[#allocation5 + $0x4] sm:$0xf]
        %v253 = vld [vmem:[#allocation5 + $0x8] sm:$0xf]
        %v254 = vld [vmem:[#allocation5 + $0xc] sm:$0xf]
        %v255 = vld [vmem:[#allocation5 + $0x10] sm:$0xf]
        %v256 = vld [vmem:[#allocation5 + $0x14] sm:$0xf]
        %v257 = vld [vmem:[#allocation5 + $0x18] sm:$0xf]
        %v258 = vld [vmem:[#allocation5 + $0x1c] sm:$0xf]
        %v259 = vld [vmem:[#allocation5 + $0x20] sm:$0xf]
        %v260 = vld [vmem:[#allocation5 + $0x24] sm:$0xf]
        %v261 = vld [vmem:[#allocation5 + $0x28] sm:$0xf]
        %v262 = vld [vmem:[#allocation5 + $0x2c] sm:$0xf]
        %v263 = vld [vmem:[#allocation5 + $0x30] sm:$0xf]
        %v264 = vld [vmem:[#allocation5 + $0x34] sm:$0xf]
        %v265 = vld [vmem:[#allocation5 + $0x38] sm:$0xf]
        %v266 = vld [vmem:[#allocation5 + $0x3c] sm:$0xf]
        %v267 = vld [vmem:[%s235] sm:$0x1]
        %v269 = vlaneseq
        %v270 = vshrl.u32 %v269, 7
        %v271 = vsub.s32 0, %v270
        %v272 = vrot.slane %v267, %v271
        %v290 = vunpack.c.l.b16 %v251
        %v291 = vunpack.c.l.b16 %v252
        %v292 = vunpack.c.l.b16 %v253
        %v293 = vunpack.c.l.b16 %v254
        %v294 = vunpack.c.l.b16 %v255
        %v295 = vunpack.c.l.b16 %v256
        %v296 = vunpack.c.l.b16 %v257
        %v297 = vunpack.c.l.b16 %v258
        %v298 = vunpack.c.l.b16 %v259
        %v299 = vunpack.c.l.b16 %v260
        %v300 = vunpack.c.l.b16 %v261
        %v301 = vunpack.c.l.b16 %v262
        %v302 = vunpack.c.l.b16 %v263
        %v303 = vunpack.c.l.b16 %v264
        %v304 = vunpack.c.l.b16 %v265
        %v305 = vunpack.c.l.b16 %v266
        %v306 = vpack.c.b16 %v291, %v290
        %v307 = vpack.c.b16 %v293, %v292
        %v308 = vpack.c.b16 %v295, %v294
        %v309 = vpack.c.b16 %v297, %v296
        %v310 = vpack.c.b16 %v299, %v298
        %v311 = vpack.c.b16 %v301, %v300
        %v312 = vpack.c.b16 %v303, %v302
        %v313 = vpack.c.b16 %v305, %v304
        %322 = vmatprep.subr.bf16.mxu0 0
        %323 = vmatpush1.bf16.msra.mxu0 %v306
        %324 = vmatprep.subr.bf16.mxu0 0
        %325 = vmatpush1.bf16.msra.mxu0 %v307
        %326 = vmatprep.subr.bf16.mxu0 0
        %327 = vmatpush1.bf16.msra.mxu0 %v308
        %328 = vmatprep.subr.bf16.mxu0 0
        %329 = vmatpush1.bf16.msra.mxu0 %v309
        %330 = vmatprep.subr.bf16.mxu0 0
        %331 = vmatpush1.bf16.msra.mxu0 %v310
        %332 = vmatprep.subr.bf16.mxu0 0
        %333 = vmatpush1.bf16.msra.mxu0 %v311
        %334 = vmatprep.subr.bf16.mxu0 0
        %335 = vmatpush1.bf16.msra.mxu0 %v312
        %336 = vmatprep.subr.bf16.mxu0 0
        %337 = vmatpush1.bf16.msra.mxu0 %v313
        %338 = vmatprep.subr.bf16.mxu0 0
        %339 = vmatpush1.bf16.msra.mxu0 0
        %340 = vmatprep.subr.bf16.mxu0 0
        %341 = vmatpush1.bf16.msra.mxu0 0
        %342 = vmatprep.subr.bf16.mxu0 0
        %343 = vmatpush1.bf16.msra.mxu0 0
        %344 = vmatprep.subr.bf16.mxu0 0
        %345 = vmatpush1.bf16.msra.mxu0 0
        %346 = vmatprep.subr.bf16.mxu0 0
        %347 = vmatpush1.bf16.msra.mxu0 0
        %348 = vmatprep.subr.bf16.mxu0 0
        %349 = vmatpush1.bf16.msra.mxu0 0
        %350 = vmatprep.subr.bf16.mxu0 0
        %351 = vmatpush1.bf16.msra.mxu0 0
        %352 = vmatprep.subr.bf16.mxu0 0
        %353 = vmatpush1.bf16.msra.mxu0 0
        %354 = vmatprep.mubr.bf16.mxu0 0
        %355 = vmatmul.mubr.bf16.gmra.mrb[0].mxu0 %v250
        %v356 = vpop.f32.mrb[0].mxu0
        %v357 = vadd.f32 %v272, %v356
        %v358 = vpop.f32.mrb[0].mxu0
        %v359 = vpop.f32.mrb[0].mxu0
        %v360 = vpop.f32.mrb[0].mxu0
        %361 = vdwg.mxu0
        %362 = vst [vmem:[%s232] sm:$0xff] %v357
        %s363 = sand.u32 %s121, 1
        %s364 = scalar_lea.sflag [#allocation4], %s363
        %s365 = sand.u32 %s121, 1
        %s366 = smul.addr %s365, 8
        %s367 = scalar_lea.vmem [#allocation7], %s366
        // Predicated region
        $region41: #{tpu_custom_call.1} parent=31 // pred_check
          %p368 = pneg %p131
        $region42: #{tpu_custom_call.1} parent=31 // pred_check_branch
          %370 = sbr.rel (%p368) target = $region44
        $region43: #{tpu_custom_call.1} parent=31 // pred_region
          %s372 = ssub.s32 128, 128
          %373 = vsyncadd %s364, %s372
          %s374 = sadd.s32 %s26, %s25
          %s375 = smul.addr %s374, 128
          %s376 = scalar_lea.hbm %s3, %s375
          %s378 = sshll.u32 %s367, 4
          %s379 = int_to_ptr.vmem [resolvable:$true] %s378
          %381 = dma.vmem_to_hbm [thread:$0]  %s379, 128, %s376, %s364
        $region44: #{tpu_custom_call.1} parent=31 // pred_fallthru
          _
      $region32: #{tpu_custom_call.1} parent=5 // pred_fallthru
        _
      %p382 = scmp.le.s32.totalorder 2, %s16
      // Predicated region
      $region45: #{tpu_custom_call.1} parent=5 // pred_check
        %p383 = pneg %p382
      $region46: #{tpu_custom_call.1} parent=5 // pred_check_branch
        %385 = sbr.rel (%p383) target = $region48
      $region47: #{tpu_custom_call.1} parent=5 // pred_region
        %s386 = ssub.s32 %s16, 2
        // Predicated region
        $region49: #{tpu_custom_call.1} parent=47 // pred_check
          %p387 = pneg %p137
        $region50: #{tpu_custom_call.1} parent=47 // pred_check_branch
          %389 = sbr.rel (%p387) target = $region52
        $region51: #{tpu_custom_call.1} parent=47 // pred_region
          %s390 = sand.u32 %s122, 1
          %s391 = scalar_lea.sflag [#allocation4], %s390
          %s392 = sand.u32 %s122, 1
          %s393 = smul.addr %s392, 8
          %s394 = scalar_lea.vmem [#allocation7], %s393
          %395 = dma.done %s391, 128
        $region52: #{tpu_custom_call.1} parent=47 // pred_fallthru
          _
      $region48: #{tpu_custom_call.1} parent=5 // pred_fallthru
        _
    $region6: #{tpu_custom_call.1} parent=1 // loop_footer
      %s20 = sadd.s32 1, %s16
    $region7: #{tpu_custom_call.1} parent=1 // loop_footer_branch
      %15 = sbr.rel target = $region3
    $region8: #{tpu_custom_call.1} parent=1 // loop_exit
      _
    %396 = vsyncpa [#allocation3], 1
    %s397 = scalar_lea.sflag [#allocation3], 1
    %398 = vsyncpa %s397, 1
    %399 = vsyncpa [#allocation6], 1
    %400 = vsyncpa [#allocation4], 1
    %s401 = scalar_lea.sflag [#allocation4], 1
    %402 = vsyncpa %s401, 1

</llo_original>
